<compile_context>
chip_gen: v7x
topology: tpu7x:2x2x1
jax: 0.10.0
libtpu: 0.0.40
codegen_flags: <defaults>
</compile_context>

<pallas_src>
import functools
import math

import jax
import jax.numpy as jnp
from jax import lax
from jax.experimental import pallas as pl
from jax.experimental.pallas import tpu as pltpu

LANES = 128
SUBLANES = 8
CHUNK_ROWS = 128          # inner-loop chunk: 128x128 f32 = 64 KiB per input
MAX_TR = 8192             # row-tile cap: 8192x128 f32 = 4 MiB per input tile
                          #   -> 2 inputs x 2 pipeline buffers = 16 MiB VMEM


def _cdiv(a, b):
    return -(-a // b)


def _round_up(x, m):
    return _cdiv(x, m) * m


def _partial_sums_kernel(scalar_ref, pred_ref, targ_ref, out_ref, *,
                         chunk, ragged, last_rows, last_chunks):
    """Per-tile partial reduction, chunked to bound the live vreg set.

    out_ref is a (16, 128) f32 block: rows 0:8 hold the lane/sublane partial
    sums of (pred - targ)^2 for this tile, rows 8:16 the partial sums of
    relu(-(pred*std + mean)).  The tiny cross-lane reduce of the
    (n_tiles, 16, 128) result happens once in the wrapper.
    """
    mean = scalar_ref[0]
    std = scalar_ref[1]
    tr, lanes = pred_ref.shape
    n_chunks = tr // chunk          # tr is a multiple of chunk by construction

    def chunk_sums(k, valid_rows):
        r0 = pl.multiple_of(k * chunk, chunk)
        p = pred_ref[pl.ds(r0, chunk), :].astype(jnp.float32)
        t = targ_ref[pl.ds(r0, chunk), :].astype(jnp.float32)
        d = p - t
        sq = d * d
        pen = jnp.maximum(-(p * std + mean), 0.0)
        if valid_rows is not None:
            # Select (not multiply) so garbage/NaN in the OOB rows of a
            # partial last block cannot leak into the sums.
            row_ids = lax.broadcasted_iota(jnp.int32, (chunk, lanes), 0)
            m = row_ids < (valid_rows - k * chunk)
            sq = jnp.where(m, sq, 0.0)
            pen = jnp.where(m, pen, 0.0)
        sq_s = jnp.sum(sq.reshape(chunk // SUBLANES, SUBLANES, lanes), axis=0)
        pen_s = jnp.sum(pen.reshape(chunk // SUBLANES, SUBLANES, lanes), axis=0)
        return sq_s, pen_s

    def make_body(valid_rows):
        def body(k, carry):
            sq_acc, pen_acc = carry
            sq_s, pen_s = chunk_sums(k, valid_rows)
            return sq_acc + sq_s, pen_acc + pen_s
        return body

    init = (jnp.zeros((SUBLANES, lanes), jnp.float32),
            jnp.zeros((SUBLANES, lanes), jnp.float32))

    def store(acc):
        sq_acc, pen_acc = acc
        out_ref[0:SUBLANES, :] = sq_acc
        out_ref[SUBLANES:2 * SUBLANES, :] = pen_acc

    if not ragged:
        # Common case: tile fully valid, no masking anywhere in the pipeline.
        store(lax.fori_loop(0, n_chunks, make_body(None), init))
    else:
        i = pl.program_id(0)
        last = pl.num_programs(0) - 1

        @pl.when(i != last)
        def _():
            store(lax.fori_loop(0, n_chunks, make_body(None), init))

        @pl.when(i == last)
        def _():
            store(lax.fori_loop(0, last_chunks, make_body(last_rows), init))


def penalized_mse_loss(predictions, targets, mean=0.0, std=0.0,
                       penalty_factor=10.0):
    """Pallas TPU equivalent of PenalizedMSELoss.forward (mean/std scalars)."""
    assert predictions.shape == targets.shape
    n_total = int(math.prod(predictions.shape))

    mean_f = jnp.asarray(mean, dtype=jnp.float32)
    std_f = jnp.asarray(std, dtype=jnp.float32)
    pf_f = jnp.asarray(penalty_factor, dtype=jnp.float32)
    scalars = jnp.stack([mean_f, std_f])          # SMEM scalars (no recompile)

    p_flat = predictions.reshape(-1)
    t_flat = targets.reshape(-1)

    n_full_rows = n_total // LANES
    n_kernel = n_full_rows * LANES                # elements handled in-kernel
    sq_sum = jnp.float32(0.0)
    pen_sum = jnp.float32(0.0)

    if n_full_rows > 0:
        # Row-tile size: multiple of the dtype-dependent sublane packing
        # (8 rows for f32, 16 for bf16, 32 for int8/fp8), multiple of
        # CHUNK_ROWS once the inner chunk loop kicks in, capped at MAX_TR,
        # and split so v7x's two TensorCores each get >= 1 grid block.
        itemsize = min(predictions.dtype.itemsize, targets.dtype.itemsize)
        row_align = SUBLANES * max(1, 4 // max(1, itemsize))
        tr = _round_up(n_full_rows, row_align)
        if tr > CHUNK_ROWS:
            tr = min(MAX_TR, _round_up(tr, CHUNK_ROWS))
        if n_full_rows >= 2 * CHUNK_ROWS and _cdiv(n_full_rows, tr) < 2:
            tr = _round_up(_cdiv(n_full_rows, 2), CHUNK_ROWS)
        chunk = min(CHUNK_ROWS, tr)

        n_tiles = _cdiv(n_full_rows, tr)
        last_rows = n_full_rows - (n_tiles - 1) * tr
        ragged = last_rows != tr
        last_chunks = _cdiv(last_rows, chunk)

        # Free reshape of the contiguous prefix -- no jnp.pad copy.
        p2 = p_flat[:n_kernel].reshape(n_full_rows, LANES)
        t2 = t_flat[:n_kernel].reshape(n_full_rows, LANES)

        kernel = functools.partial(_partial_sums_kernel, chunk=chunk,
                                   ragged=ragged, last_rows=last_rows,
                                   last_chunks=last_chunks)

        in_bytes = p2.size * p2.dtype.itemsize + t2.size * t2.dtype.itemsize
        out_bytes = n_tiles * 2 * SUBLANES * LANES * 4

        partial = pl.pallas_call(
            kernel,
            out_shape=jax.ShapeDtypeStruct((n_tiles, 2 * SUBLANES, LANES),
                                           jnp.float32),
            grid_spec=pltpu.PrefetchScalarGridSpec(
                num_scalar_prefetch=0,
                grid=(n_tiles,),
                in_specs=[
                    pl.BlockSpec(memory_space=pltpu.MemorySpace.SMEM),  # [mean, std]
                    pl.BlockSpec((tr, LANES), lambda i: (i, 0)),        # pred tile
                    pl.BlockSpec((tr, LANES), lambda i: (i, 0)),        # targ tile
                ],
                out_specs=pl.BlockSpec((None, 2 * SUBLANES, LANES),
                                       lambda i: (i, 0, 0)),
            ),
            compiler_params=pltpu.CompilerParams(
                dimension_semantics=("parallel",),
                vmem_limit_bytes=32 * 1024 * 1024),
            cost_estimate=pl.CostEstimate(
                flops=6 * n_kernel, transcendentals=0,
                bytes_accessed=in_bytes + out_bytes),
        )(scalars, p2, t2)

        sq_sum = sq_sum + jnp.sum(partial[:, :SUBLANES, :])
        pen_sum = pen_sum + jnp.sum(partial[:, SUBLANES:, :])

    if n_kernel != n_total:
        # Sub-128-element lane tail: fold into the wrapper's final reduction
        # (avoids a full jnp.pad copy and any masking in the kernel hot loop).
        p_tail = p_flat[n_kernel:].astype(jnp.float32)
        t_tail = t_flat[n_kernel:].astype(jnp.float32)
        d_tail = p_tail - t_tail
        sq_sum = sq_sum + jnp.sum(d_tail * d_tail)
        pen_sum = pen_sum + jnp.sum(
            jnp.maximum(-(p_tail * std_f + mean_f), 0.0))

    return sq_sum / jnp.float32(n_total) + pf_f * pen_sum


def _reference(predictions, targets, mean=0.0, std=0.0, penalty_factor=10.0):
    mse = jnp.mean((predictions - targets) ** 2)
    penalty = jnp.sum(jnp.maximum(-(predictions * std + mean), 0.0))
    return mse + penalty_factor * penalty


if __name__ == "__main__":
    key = jax.random.PRNGKey(0)
    k1, k2, k3, k4 = jax.random.split(key, 4)
    # shapes consistent with an image-regression use (NCHW): batch=2, ch=4, 16x16
    predictions = jax.random.normal(k1, (2, 4, 16, 16), dtype=jnp.float32)
    targets = jax.random.normal(k2, (2, 4, 16, 16), dtype=jnp.float32)

    # default call (mean=0, std=0 -> penalty term is zero, like PyTorch default)
    loss0 = penalized_mse_loss(predictions, targets)
    jax.block_until_ready(loss0)

    # non-trivial mean/std to exercise the penalty path (same compiled kernel:
    # mean/std are SMEM scalars, not baked constants)
    loss1 = penalized_mse_loss(predictions, targets, mean=0.5, std=1.5)
    jax.block_until_ready(loss1)

    ref0 = _reference(predictions, targets)
    ref1 = _reference(predictions, targets, mean=0.5, std=1.5)
    assert jnp.allclose(loss0, ref0, rtol=1e-4, atol=1e-5), (loss0, ref0)
    assert jnp.allclose(loss1, ref1, rtol=1e-4, atol=1e-5), (loss1, ref1)

    # Ragged size: multi-tile grid, masked last tile, <128-element lane tail.
    # (negative mean makes OOB/tail elements contribute if masking were wrong)
    p_r = jax.random.normal(k3, (6, 250, 33), dtype=jnp.float32)
    t_r = jax.random.normal(k4, (6, 250, 33), dtype=jnp.float32)
    loss2 = penalized_mse_loss(p_r, t_r, mean=-0.3, std=2.0)
    jax.block_until_ready(loss2)
    ref2 = _reference(p_r, t_r, mean=-0.3, std=2.0)
    assert jnp.allclose(loss2, ref2, rtol=1e-4, atol=1e-5), (loss2, ref2)

    print("KERNEL_OK")
</pallas_src>

<mosaic_0001>
module attributes {stable_mosaic.version = 11 : i64} {
  func.func @_partial_sums_kernel(%arg0: i32, %arg1: memref<2xf32, #tpu.memory_space<smem>>, %arg2: memref<16x128xf32, #tpu.memory_space<vmem>>, %arg3: memref<16x128xf32, #tpu.memory_space<vmem>>, %arg4: memref<1x16x128xf32, #tpu.memory_space<vmem>>) attributes {dimension_semantics = [#tpu.dimension_semantics<parallel>], iteration_bounds = array<i64: 1>, scalar_prefetch = 0 : i64, scratch_operands = 0 : i64, tpu.core_type = #tpu.core_type<tc>, window_params = [{transform_indices = @transform_0, window_bounds = array<i64: 2>}, {transform_indices = @transform_1, window_bounds = array<i64: 16, 128>}, {transform_indices = @transform_2, window_bounds = array<i64: 16, 128>}, {transform_indices = @transform_3, window_bounds = array<i64: 1, 16, 128>}]} {
    %c0 = arith.constant 0 : index
    %0 = memref.load %arg1[%c0] : memref<2xf32, #tpu.memory_space<smem>>
    %c1 = arith.constant 1 : index
    %1 = memref.load %arg1[%c1] : memref<2xf32, #tpu.memory_space<smem>>
    %cst = arith.constant 0.000000e+00 : f32
    %2 = vector.broadcast %cst : f32 to vector<8x128xf32>
    %cst_0 = arith.constant 0.000000e+00 : f32
    %3 = vector.broadcast %cst_0 : f32 to vector<8x128xf32>
    %c0_i32 = arith.constant 0 : i32
    %c16_i32 = arith.constant 16 : i32
    %4 = arith.muli %c0_i32, %c16_i32 : i32
    %5 = tpu.assume_multiple %4, 16 : i32
    %6 = arith.index_cast %5 : i32 to index
    %c0_1 = arith.constant 0 : index
    %7 = vector.load %arg2[%6, %c0_1] : memref<16x128xf32, #tpu.memory_space<vmem>>, vector<16x128xf32>
    %8 = arith.index_cast %5 : i32 to index
    %c0_2 = arith.constant 0 : index
    %9 = vector.load %arg3[%8, %c0_2] : memref<16x128xf32, #tpu.memory_space<vmem>>, vector<16x128xf32>
    %10 = arith.subf %7, %9 : vector<16x128xf32>
    %11 = arith.mulf %10, %10 : vector<16x128xf32>
    %12 = vector.broadcast %1 : f32 to vector<16x128xf32>
    %13 = arith.mulf %7, %12 : vector<16x128xf32>
    %14 = vector.broadcast %0 : f32 to vector<16x128xf32>
    %15 = arith.addf %13, %14 : vector<16x128xf32>
    %cst_3 = arith.constant 0.000000e+00 : f32
    %16 = vector.broadcast %cst_3 : f32 to vector<16x128xf32>
    %17 = arith.subf %16, %15 : vector<16x128xf32>
    %cst_4 = arith.constant 0.000000e+00 : f32
    %18 = vector.broadcast %cst_4 : f32 to vector<16x128xf32>
    %19 = arith.maximumf %17, %18 : vector<16x128xf32>
    %20 = vector.shape_cast %11 : vector<16x128xf32> to vector<2x8x128xf32>
    %cst_5 = arith.constant dense<0.000000e+00> : vector<8x128xf32>
    %21 = vector.multi_reduction <add>, %20, %cst_5 [0] : vector<2x8x128xf32> to vector<8x128xf32>
    %22 = vector.shape_cast %19 : vector<16x128xf32> to vector<2x8x128xf32>
    %cst_6 = arith.constant dense<0.000000e+00> : vector<8x128xf32>
    %23 = vector.multi_reduction <add>, %22, %cst_6 [0] : vector<2x8x128xf32> to vector<8x128xf32>
    %24 = arith.addf %2, %21 : vector<8x128xf32>
    %25 = arith.addf %3, %23 : vector<8x128xf32>
    %c1_i32 = arith.constant 1 : i32
    %c0_7 = arith.constant 0 : index
    %c0_8 = arith.constant 0 : index
    %c0_9 = arith.constant 0 : index
    %26 = vector.load %arg4[%c0_7, %c0_8, %c0_9] : memref<1x16x128xf32, #tpu.memory_space<vmem>>, vector<1x8x128xf32>
    %27 = vector.shape_cast %26 : vector<1x8x128xf32> to vector<8x128xf32>
    %28 = vector.shape_cast %24 : vector<8x128xf32> to vector<1x8x128xf32>
    tpu.vector_store %arg4[%c0_7, %c0_8, %c0_9], %28 {strides = array<i32>} : memref<1x16x128xf32, #tpu.memory_space<vmem>>, vector<1x8x128xf32>,
    %c0_10 = arith.constant 0 : index
    %c8 = arith.constant 8 : index
    %c0_11 = arith.constant 0 : index
    %29 = vector.load %arg4[%c0_10, %c8, %c0_11] : memref<1x16x128xf32, #tpu.memory_space<vmem>>, vector<1x8x128xf32>
    %30 = vector.shape_cast %29 : vector<1x8x128xf32> to vector<8x128xf32>
    %31 = vector.shape_cast %25 : vector<8x128xf32> to vector<1x8x128xf32>
    tpu.vector_store %arg4[%c0_10, %c8, %c0_11], %31 {strides = array<i32>} : memref<1x16x128xf32, #tpu.memory_space<vmem>>, vector<1x8x128xf32>,
    return
  }
  func.func @transform_0(%arg0: i32) -> i32 {
    %c0_i32 = arith.constant 0 : i32
    %c0_i32_0 = arith.constant 0 : i32
    return %c0_i32 : i32
  }
  func.func @transform_1(%arg0: i32) -> (i32, i32) {
    %c0_i32 = arith.constant 0 : i32
    %c0_i32_0 = arith.constant 0 : i32
    return %arg0, %c0_i32 : i32, i32
  }
  func.func @transform_2(%arg0: i32) -> (i32, i32) {
    %c0_i32 = arith.constant 0 : i32
    %c0_i32_0 = arith.constant 0 : i32
    return %arg0, %c0_i32 : i32, i32
  }
  func.func @transform_3(%arg0: i32) -> (i32, i32, i32) {
    %c0_i32 = arith.constant 0 : i32
    %c0_i32_0 = arith.constant 0 : i32
    %c0_i32_1 = arith.constant 0 : i32
    return %arg0, %c0_i32, %c0_i32_0 : i32, i32, i32
  }
}

</mosaic_0001>

<llo_original>
// kernel: tpu_custom_call.1
$region0: #{tpu_custom_call.1}
  #allocation0 [shape = 'u32[]', space=smem, size = 0x4, offset = 0x4, fixed_abs, tag = 'smem constant byte address 0x4 - core index']
  #allocation1 [shape = 'u32[144,128]{1,0:T(1,128)}', space=vmem, size = 0x12000, scoped, tag = 'internal scratch']
  %s0 = inlined_call_operand.hbm [shape: f32[2], index: 0, kind: input, shape index: {}]
  %s1 = inlined_call_operand.hbm [shape: f32[16,128], index: 1, kind: input, shape index: {}]
  %s2 = inlined_call_operand.hbm [shape: f32[16,128], index: 2, kind: input, shape index: {}]
  %s3 = inlined_call_operand.hbm [shape: f32[1,16,128], index: 3, kind: output, shape index: {}]
  %s4 = sld [smem:[#allocation0]]
  $region34: #{tpu_custom_call.1} parent=0
    _
  %s6 = ssub.s32 1, %s4
  %s7 = scalar_select 0, %s6, %s4
  $region1: #{tpu_custom_call.1} parent=0
    #allocation2 [shape = 'u8[512]{0}', space=smem, size = 0x200, scoped, tag = 'input window, operand 0, single buffered']
    #allocation3 [shape = 's32[1]{0}', space=sflag, size = 0x4, scoped, tag = 'scoped memory for tpu_custom_call.1']
    #allocation4 [shape = 's32[1]{0}', space=sflag, size = 0x4, scoped, tag = 'scoped memory for tpu_custom_call.1']
    #allocation5 [shape = 's32[1]{0}', space=sflag, size = 0x4, scoped, tag = 'scoped memory for tpu_custom_call.1']
    #allocation6 [shape = 'u8[8192]{0}', space=vmem, size = 0x2000, scoped, tag = 'input window, operand 1, single buffered']
    #allocation7 [shape = 'u8[8192]{0}', space=vmem, size = 0x2000, scoped, tag = 'input window, operand 2, single buffered']
    #allocation8 [shape = 's32[1]{0}', space=sflag, size = 0x4, scoped, tag = 'scoped memory for tpu_custom_call.1']
    #allocation9 [shape = 'u8[8192]{0}', space=vmem, size = 0x2000, scoped, tag = 'output window, operand 0, single buffered']
    %8 = vsyncpa [#allocation5], 0
    %9 = vsyncpa [#allocation3], 0
    %10 = vsyncpa [#allocation8], 0
    %11 = vsyncpa [#allocation4], 0
    // Predicated region
    $region2: #{tpu_custom_call.1} parent=1 // pred_check
      _
    $region3: #{tpu_custom_call.1} parent=1 // pred_check_branch
      %13 = sbr.rel (0) target = $region5
    $region4: #{tpu_custom_call.1} parent=1 // pred_region
      %s15 = ssub.s32 16, 16
      %16 = vsyncadd [#allocation5], %s15
      %19 = dma.hbm_to_smem %s0, 16, [#allocation2], [#allocation5]
    $region5: #{tpu_custom_call.1} parent=1 // pred_fallthru
      _
    // Predicated region
    $region6: #{tpu_custom_call.1} parent=1 // pred_check
      _
    $region7: #{tpu_custom_call.1} parent=1 // pred_check_branch
      %21 = sbr.rel (0) target = $region9
    $region8: #{tpu_custom_call.1} parent=1 // pred_region
      %s23 = ssub.s32 256, 256
      %24 = vsyncadd [#allocation3], %s23
      %s25 = sshll.u32 [#allocation6], 4
      %s26 = int_to_ptr.vmem [resolvable:$true] %s25
      %31 = dma.hbm_to_vmem [thread:$0]  %s1, 256, %s26, [#allocation3], 128, 128, 8
    $region9: #{tpu_custom_call.1} parent=1 // pred_fallthru
      _
    // Predicated region
    $region10: #{tpu_custom_call.1} parent=1 // pred_check
      _
    $region11: #{tpu_custom_call.1} parent=1 // pred_check_branch
      %33 = sbr.rel (0) target = $region13
    $region12: #{tpu_custom_call.1} parent=1 // pred_region
      %s35 = ssub.s32 256, 256
      %36 = vsyncadd [#allocation8], %s35
      %s37 = sshll.u32 [#allocation7], 4
      %s38 = int_to_ptr.vmem [resolvable:$true] %s37
      %43 = dma.hbm_to_vmem [thread:$0]  %s2, 256, %s38, [#allocation8], 128, 128, 8
    $region13: #{tpu_custom_call.1} parent=1 // pred_fallthru
      _
    // Predicated region
    $region14: #{tpu_custom_call.1} parent=1 // pred_check
      _
    $region15: #{tpu_custom_call.1} parent=1 // pred_check_branch
      %45 = sbr.rel (0) target = $region17
    $region16: #{tpu_custom_call.1} parent=1 // pred_region
      %46 = dma.done [#allocation5], 16
    $region17: #{tpu_custom_call.1} parent=1 // pred_fallthru
      _
    // Predicated region
    $region18: #{tpu_custom_call.1} parent=1 // pred_check
      _
    $region19: #{tpu_custom_call.1} parent=1 // pred_check_branch
      %48 = sbr.rel (0) target = $region21
    $region20: #{tpu_custom_call.1} parent=1 // pred_region
      %49 = dma.done [#allocation3], 256
    $region21: #{tpu_custom_call.1} parent=1 // pred_fallthru
      _
    // Predicated region
    $region22: #{tpu_custom_call.1} parent=1 // pred_check
      _
    $region23: #{tpu_custom_call.1} parent=1 // pred_check_branch
      %51 = sbr.rel (0) target = $region25
    $region24: #{tpu_custom_call.1} parent=1 // pred_region
      %52 = dma.done [#allocation8], 256
    $region25: #{tpu_custom_call.1} parent=1 // pred_fallthru
      _
    %53 = sfence
    %s54 = sld [smem:[#allocation2]]
    %s55 = sld [smem:[#allocation2 + $0x1]]
    %v56 = vld [vmem:[#allocation6] sm:$0xff]
    %v57 = vld [vmem:[#allocation6 + $0x8] sm:$0xff]
    %v58 = vld [vmem:[#allocation7] sm:$0xff]
    %v59 = vld [vmem:[#allocation7 + $0x8] sm:$0xff]
    %v60 = vsub.f32 %v56, %v58
    %v61 = vsub.f32 %v57, %v59
    %v62 = vmul.f32 %v60, %v60
    %v63 = vmul.f32 %v61, %v61
    %v64 = vstv %s55
    %v65 = vmul.f32 %v56, %v64
    %v66 = vmul.f32 %v57, %v64
    %v67 = vstv %s54
    %v68 = vadd.f32 %v65, %v67
    %v69 = vadd.f32 %v66, %v67
    %v70 = vsub.f32 0.0, %v68
    %v71 = vsub.f32 0.0, %v69
    %v72 = vmax.f32 %v70, 0.0
    %v73 = vmax.f32 %v71, 0.0
    %v74 = vadd.f32 %v62, %v63
    %v75 = vadd.f32 %v72, %v73
    %v76 = vadd.f32 %v74, 0.0
    %v77 = vadd.f32 %v75, 0.0
    %78 = vst [vmem:[#allocation9] sm:$0xff] %v76
    %79 = vst [vmem:[#allocation9 + $0x8] sm:$0xff] %v77
    // Predicated region
    $region26: #{tpu_custom_call.1} parent=1 // pred_check
      _
    $region27: #{tpu_custom_call.1} parent=1 // pred_check_branch
      %81 = sbr.rel (0) target = $region29
    $region28: #{tpu_custom_call.1} parent=1 // pred_region
      %s83 = ssub.s32 256, 256
      %84 = vsyncadd [#allocation4], %s83
      %s85 = sshll.u32 [#allocation9], 4
      %s86 = int_to_ptr.vmem [resolvable:$true] %s85
      %91 = dma.vmem_to_hbm [thread:$0]  %s86, 256, %s3, [#allocation4], 128, 128, 8
    $region29: #{tpu_custom_call.1} parent=1 // pred_fallthru
      _
    // Predicated region
    $region30: #{tpu_custom_call.1} parent=1 // pred_check
      _
    $region31: #{tpu_custom_call.1} parent=1 // pred_check_branch
      %93 = sbr.rel (0) target = $region33
    $region32: #{tpu_custom_call.1} parent=1 // pred_region
      %94 = dma.done [#allocation4], 256
    $region33: #{tpu_custom_call.1} parent=1 // pred_fallthru
      _
    %95 = vsyncpa [#allocation3], 1
    %96 = vsyncpa [#allocation8], 1
    %97 = vsyncpa [#allocation4], 1
    %98 = vsyncpa [#allocation5], 1

</llo_original>
